<compile_context>
chip_gen: v6e
topology: v6e:2x2x1
jax: 0.10.0
libtpu: 0.0.40
codegen_flags: <defaults>
</compile_context>

<pallas_src>
import functools

import jax
import jax.numpy as jnp
from jax import lax
from jax.experimental import pallas as pl
from jax.experimental.pallas import tpu as pltpu


LANES = 128      # vreg lane width; lane-dense output padding
B1_COL = 96      # lane offset of the Linear bias inside the packed parameter slab


# ---------------------------------------------------------------------------
# Kernel: one grid step == one batch element.
#   conv (one MXU matmul over im2col) -> +bias -> ReLU -> flatten (plain reshape)
#   -> Linear -> +bias -> ReLU  (== output of children[-2])
# ---------------------------------------------------------------------------
def encoder_kernel(xcol_ref, slab_ref, w1_ref, out_ref, *, C_in, C_mid, hidden):
    K = 9 * C_in
    xcol = xcol_ref[0]                                   # (9*C_in, H*W), lane-dense
    wc = slab_ref[:C_mid, :K]                            # (C_mid, 9*C_in)
    bc = slab_ref[:C_mid, K:K + 1]                       # (C_mid, 1)
    b1 = slab_ref[0:1, B1_COL:B1_COL + hidden]           # (1, hidden)

    # Conv2d(3x3, pad=1) + bias + ReLU as a single MXU matmul on the im2col slab.
    h = jnp.dot(wc, xcol, preferred_element_type=jnp.float32) + bc   # (C_mid, H*W)
    h = jnp.maximum(h, 0.0)

    # nn.Flatten in NCHW order: with the batch axis on the grid this is a plain
    # row-major reshape (index = c*H*W + p) -- no transpose needed.
    hf = h.reshape(1, C_mid * h.shape[1])                # (1, C_mid*H*W)

    # Linear (children[3]) + ReLU (children[4]) -- what the hook captures.
    z = jnp.dot(hf, w1_ref[...], preferred_element_type=jnp.float32) + b1
    z = jnp.maximum(z, 0.0)                              # (1, hidden)

    # Lane-dense write-back: fill the whole 128-lane output row.
    pad = jnp.zeros((1, out_ref.shape[-1] - hidden), jnp.float32)
    out_ref[0] = jnp.concatenate([z, pad], axis=1)       # (1, 128)


# ---------------------------------------------------------------------------
# Jitted per-call path: 1-op im2col + pallas_call + output slice. No weight
# relayouts happen here (they are done once in prepare_params).
# ---------------------------------------------------------------------------
def _base_encoder_forward(x_nchw, slab, w1_k):
    B, C_in, H, W = x_nchw.shape
    HW = H * W
    hidden = w1_k.shape[1]
    C_mid = w1_k.shape[0] // HW

    # Single-op im2col: (B, 9*C_in, H, W) with feature index = c*9 + kh*3 + kw
    # (channel-major), exact 0/1 selection at HIGHEST precision.
    patches = lax.conv_general_dilated_patches(
        x_nchw, filter_shape=(3, 3), window_strides=(1, 1),
        padding=((1, 1), (1, 1)),
        dimension_numbers=('NCHW', 'OIHW', 'NCHW'),
        precision=lax.Precision.HIGHEST)
    xcol = patches.reshape(B, 9 * C_in, HW)              # contiguous merge -> free reshape

    kernel = functools.partial(encoder_kernel, C_in=C_in, C_mid=C_mid, hidden=hidden)

    flops = B * (2 * C_mid * (9 * C_in) * HW + 2 * (C_mid * HW) * hidden)
    bytes_accessed = 4 * (xcol.size + slab.size + w1_k.size + B * LANES)

    out = pl.pallas_call(
        kernel,
        out_shape=jax.ShapeDtypeStruct((B, 1, LANES), jnp.float32),
        grid=(B,),
        in_specs=[
            pl.BlockSpec((1, 9 * C_in, HW), lambda b: (b, 0, 0)),       # per-batch block
            pl.BlockSpec((8, LANES), lambda b: (0, 0)),                 # constant -> DMA once
            pl.BlockSpec((C_mid * HW, hidden), lambda b: (0, 0)),       # constant -> DMA once
        ],
        out_specs=pl.BlockSpec((1, 1, LANES), lambda b: (b, 0, 0)),
        compiler_params=pltpu.CompilerParams(dimension_semantics=("parallel",)),
        cost_estimate=pl.CostEstimate(flops=flops, transcendentals=0,
                                      bytes_accessed=bytes_accessed),
    )(xcol, slab, w1_k)
    return out[:, 0, :hidden]


base_encoder_forward = jax.jit(_base_encoder_forward)


# ---------------------------------------------------------------------------
# One-time parameter re-layout (outside the per-call jit path).
# ---------------------------------------------------------------------------
def prepare_params(params):
    wc_oihw, bc, w1_pt, b1 = params                      # PyTorch-shaped params
    C_mid, C_in = wc_oihw.shape[0], wc_oihw.shape[1]
    hidden = w1_pt.shape[0]
    assert C_mid <= 8, C_mid
    assert 9 * C_in + 1 <= B1_COL, C_in
    assert hidden <= LANES - B1_COL, hidden

    # (8,128) parameter slab:
    #   rows 0..C_mid, cols [0, 9*C_in)      : conv weight, index (c*9 + kh*3 + kw)
    #   rows 0..C_mid, col  9*C_in           : conv bias
    #   row 0,         cols [B1_COL, +hidden): linear bias
    slab = jnp.zeros((8, LANES), jnp.float32)
    slab = slab.at[:C_mid, :9 * C_in].set(wc_oihw.reshape(C_mid, 9 * C_in))
    slab = slab.at[:C_mid, 9 * C_in:9 * C_in + 1].set(bc.reshape(C_mid, 1))
    slab = slab.at[0, B1_COL:B1_COL + hidden].set(b1)

    # Linear weight transposed ONCE: row index = c*H*W + p (PyTorch NCHW flatten order).
    w1_k = jnp.asarray(w1_pt).T                          # (C_mid*H*W, hidden)
    return slab, w1_k


# ---------------------------------------------------------------------------
# Pure-JAX reference (mirrors the PyTorch NCHW computation) for validation.
# ---------------------------------------------------------------------------
def reference_forward(x_nchw, params):
    wc_oihw, bc, w1_pt, b1 = params
    y = lax.conv_general_dilated(
        x_nchw, wc_oihw, window_strides=(1, 1), padding=((1, 1), (1, 1)),
        dimension_numbers=('NCHW', 'OIHW', 'NCHW'),
        precision=lax.Precision.HIGHEST)
    y = jnp.maximum(y + bc.reshape(1, -1, 1, 1), 0.0)
    yf = y.reshape(y.shape[0], -1)                       # NCHW flatten (like nn.Flatten)
    z = jnp.dot(yf, w1_pt.T, precision=lax.Precision.HIGHEST) + b1
    return jnp.maximum(z, 0.0)                           # output of children[-2] (ReLU)


if __name__ == "__main__":
    key = jax.random.PRNGKey(0)
    B, C_in, H, W = 2, 4, 16, 16
    C_mid, hidden = 8, 32

    k1, k2, k3, k4, k5 = jax.random.split(key, 5)
    x = jax.random.normal(k1, (B, C_in, H, W), jnp.float32)
    wc = jax.random.normal(k2, (C_mid, C_in, 3, 3), jnp.float32) * 0.1   # Conv2d weight (OIHW)
    bc = jax.random.normal(k3, (C_mid,), jnp.float32) * 0.1
    w1 = jax.random.normal(k4, (hidden, C_mid * H * W), jnp.float32) * 0.02
    b1 = jax.random.normal(k5, (hidden,), jnp.float32) * 0.1
    params = (wc, bc, w1, b1)

    slab, w1_k = prepare_params(params)                  # one-time re-layout
    out = jax.block_until_ready(base_encoder_forward(x, slab, w1_k))
    ref = jax.block_until_ready(reference_forward(x, params))

    assert out.shape == (B, hidden), out.shape
    max_err = float(jnp.max(jnp.abs(out - ref)))
    assert jnp.allclose(out, ref, atol=1e-4, rtol=1e-4), max_err
    print("KERNEL_OK")
</pallas_src>

<mosaic_0001>
module attributes {stable_mosaic.version = 11 : i64} {
  func.func @encoder_kernel(%arg0: i32, %arg1: memref<1x36x256xf32, #tpu.memory_space<vmem>>, %arg2: memref<8x128xf32, #tpu.memory_space<vmem>>, %arg3: memref<2048x32xf32, #tpu.memory_space<vmem>>, %arg4: memref<1x1x128xf32, #tpu.memory_space<vmem>>) attributes {dimension_semantics = [#tpu.dimension_semantics<parallel>], iteration_bounds = array<i64: 2>, scalar_prefetch = 0 : i64, scratch_operands = 0 : i64, tpu.core_type = #tpu.core_type<tc>, window_params = [{transform_indices = @transform_0, window_bounds = array<i64: 1, 36, 256>}, {pipeline_mode = #tpu.pipeline_mode<synchronous>, transform_indices = @transform_1, window_bounds = array<i64: 8, 128>}, {pipeline_mode = #tpu.pipeline_mode<synchronous>, transform_indices = @transform_2, window_bounds = array<i64: 2048, 32>}, {transform_indices = @transform_3, window_bounds = array<i64: 1, 1, 128>}]} {
    %c0 = arith.constant 0 : index
    %c0_0 = arith.constant 0 : index
    %c0_1 = arith.constant 0 : index
    %0 = vector.load %arg1[%c0, %c0_0, %c0_1] : memref<1x36x256xf32, #tpu.memory_space<vmem>>, vector<1x36x256xf32>
    %1 = vector.shape_cast %0 : vector<1x36x256xf32> to vector<36x256xf32>
    %c0_2 = arith.constant 0 : index
    %c0_3 = arith.constant 0 : index
    %2 = vector.load %arg2[%c0_2, %c0_3] : memref<8x128xf32, #tpu.memory_space<vmem>>, vector<8x36xf32>
    %c0_4 = arith.constant 0 : index
    %c36 = arith.constant 36 : index
    %3 = vector.load %arg2[%c0_4, %c36] : memref<8x128xf32, #tpu.memory_space<vmem>>, vector<8x1xf32>
    %c0_5 = arith.constant 0 : index
    %c96 = arith.constant 96 : index
    %4 = vector.load %arg2[%c0_5, %c96] : memref<8x128xf32, #tpu.memory_space<vmem>>, vector<1x32xf32>
    %cst = arith.constant dense<0.000000e+00> : vector<8x256xf32>
    %5 = tpu.matmul %2, %1, %cst {dimension_numbers = #tpu.dot_dimension_numbers<[1], [0], [0], [1], [0, 0, 1, 1], [], []>} : vector<8x36xf32>, vector<36x256xf32>, vector<8x256xf32> -> vector<8x256xf32>
    %6 = vector.broadcast %3 : vector<8x1xf32> to vector<8x256xf32>
    %7 = arith.addf %5, %6 : vector<8x256xf32>
    %cst_6 = arith.constant 0.000000e+00 : f32
    %8 = vector.broadcast %cst_6 : f32 to vector<8x256xf32>
    %9 = arith.maximumf %7, %8 : vector<8x256xf32>
    %10 = vector.shape_cast %9 : vector<8x256xf32> to vector<1x2048xf32>
    %c0_7 = arith.constant 0 : index
    %c0_8 = arith.constant 0 : index
    %11 = vector.load %arg3[%c0_7, %c0_8] : memref<2048x32xf32, #tpu.memory_space<vmem>>, vector<2048x32xf32>
    %cst_9 = arith.constant dense<0.000000e+00> : vector<1x32xf32>
    %12 = tpu.matmul %10, %11, %cst_9 {dimension_numbers = #tpu.dot_dimension_numbers<[1], [0], [0], [1], [0, 0, 1, 1], [], []>} : vector<1x2048xf32>, vector<2048x32xf32>, vector<1x32xf32> -> vector<1x32xf32>
    %13 = arith.addf %12, %4 : vector<1x32xf32>
    %cst_10 = arith.constant 0.000000e+00 : f32
    %14 = vector.broadcast %cst_10 : f32 to vector<1x32xf32>
    %15 = arith.maximumf %13, %14 : vector<1x32xf32>
    %cst_11 = arith.constant 0.000000e+00 : f32
    %16 = vector.broadcast %cst_11 : f32 to vector<1x96xf32>
    %17 = tpu.concatenate %15, %16 in 1 : vector<1x32xf32>, vector<1x96xf32> -> vector<1x128xf32>
    %c0_12 = arith.constant 0 : index
    %c0_13 = arith.constant 0 : index
    %c0_14 = arith.constant 0 : index
    %18 = vector.load %arg4[%c0_12, %c0_13, %c0_14] : memref<1x1x128xf32, #tpu.memory_space<vmem>>, vector<1x1x128xf32>
    %19 = vector.shape_cast %18 : vector<1x1x128xf32> to vector<1x128xf32>
    %20 = vector.shape_cast %17 : vector<1x128xf32> to vector<1x1x128xf32>
    tpu.vector_store %arg4[%c0_12, %c0_13, %c0_14], %20 {strides = array<i32>} : memref<1x1x128xf32, #tpu.memory_space<vmem>>, vector<1x1x128xf32>,
    return
  }
  func.func @transform_0(%arg0: i32) -> (i32, i32, i32) {
    %c0_i32 = arith.constant 0 : i32
    %c0_i32_0 = arith.constant 0 : i32
    %c0_i32_1 = arith.constant 0 : i32
    return %arg0, %c0_i32, %c0_i32_0 : i32, i32, i32
  }
  func.func @transform_1(%arg0: i32) -> (i32, i32) {
    %c0_i32 = arith.constant 0 : i32
    %c0_i32_0 = arith.constant 0 : i32
    %c0_i32_1 = arith.constant 0 : i32
    return %c0_i32, %c0_i32_0 : i32, i32
  }
  func.func @transform_2(%arg0: i32) -> (i32, i32) {
    %c0_i32 = arith.constant 0 : i32
    %c0_i32_0 = arith.constant 0 : i32
    %c0_i32_1 = arith.constant 0 : i32
    return %c0_i32, %c0_i32_0 : i32, i32
  }
  func.func @transform_3(%arg0: i32) -> (i32, i32, i32) {
    %c0_i32 = arith.constant 0 : i32
    %c0_i32_0 = arith.constant 0 : i32
    %c0_i32_1 = arith.constant 0 : i32
    return %arg0, %c0_i32, %c0_i32_0 : i32, i32, i32
  }
}

</mosaic_0001>

<llo_original>
// kernel: _base_encoder_forward.1
$region0: #{_base_encoder_forward.1}
  #allocation0 [shape = 'u32[]', space=smem, size = 0x4, offset = 0x4, fixed_abs, tag = 'smem constant byte address 0x4 - core index']
  #allocation1 [shape = 'u32[144,128]{1,0:T(1,128)}', space=vmem, size = 0x12000, scoped, tag = 'internal scratch']
  %s0 = inlined_call_operand.vmem [shape: f32[2,36,256], index: 0, kind: input, shape index: {}]
  %s1 = inlined_call_operand.vmem [shape: f32[8,128], index: 1, kind: input, shape index: {}]
  %s2 = inlined_call_operand.vmem [shape: f32[2048,32], index: 2, kind: input, shape index: {}]
  %s3 = inlined_call_operand.hbm [shape: f32[2,1,128], index: 3, kind: output, shape index: {}]
  %s4 = sld [smem:[#allocation0]]
  $region45: #{_base_encoder_forward.1} parent=0
    _
  %s6 = ssub.s32 1, %s4
  %s7 = scalar_select 0, %s6, %s4
  $region1: #{_base_encoder_forward.1} parent=0
    #allocation2 [shape = 'u8[1024]{0}', space=vmem, size = 0x400, scoped, tag = 'output window, operand 0']
    #allocation3 [shape = 's32[2]{0}', space=sflag, size = 0x8, scoped, tag = 'scoped memory for _base_encoder_forward.1']
    %8 = vsyncpa [#allocation3], 0
    %s9 = scalar_lea.sflag [#allocation3], 1
    %10 = vsyncpa %s9, 0
    loop: start=0, step=1, limit=4
    $region2: #{_base_encoder_forward.1} parent=1 // loop_pre_header
      _
    $region3: #{_base_encoder_forward.1} parent=1 // loop_header
      %s12 = sphi 0, %s16
      %p13 = scmp.ge.s32.totalorder %s12, 4
      %s22 = sphi 0, %s24
      %s25 = sphi 0, %s22
      %s26 = sphi 0, %s25
      %s42 = sphi 0, %s26
      %s46 = sphi 0, %s46
      %s48 = sphi 0, %s46
      %s49 = sphi 0, %s48
      %s63 = sphi 0, %s49
      %s67 = sphi 0, %s67
      %s69 = sphi 0, %s67
      %s70 = sphi 0, %s69
      %s84 = sphi 0, %s70
      %s90 = sphi 0, %s92
      %s93 = sphi 0, %s90
      %s94 = sphi 0, %s93
      %s110 = sphi 0, %s94
    $region4: #{_base_encoder_forward.1} parent=1 // loop_header_branch
      %15 = sbr.rel (%p13) target = $region8
    $region5: #{_base_encoder_forward.1} parent=1 // loop_body
      %s17 = ssub.s32 %s12, 1
      %s18 = ssub.s32 %s12, 2
      %s19 = sadd.s32 %s12, 1
      %s20 = ssub.s32 %s12, %s19
      %p21 = scmp.eq.s32.totalorder %s20, 0
      %s23 = sadd.s32 %s22, 1
      %s24 = scalar_select %p21, %s22, %s23
      %p27 = pneg %p21
      %p28 = scmp.eq.s32.totalorder %s12, 1
      %p29 = por %p27, %p28
      %p30 = scmp.ne.s32.totalorder %s22, %s25
      %p31 = scmp.eq.s32.totalorder %s12, 0
      %p32 = por %p30, %p31
      %p33 = scmp.ne.s32.totalorder %s22, %s25
      %p34 = scmp.eq.s32.totalorder %s17, 1
      %p35 = por %p33, %p34
      %p36 = scmp.ne.s32.totalorder %s25, %s26
      %p37 = scmp.eq.s32.totalorder %s17, 0
      %p38 = por %p36, %p37
      %p39 = scmp.ne.s32.totalorder %s25, %s26
      %p40 = scmp.eq.s32.totalorder %s18, 1
      %p41 = por %p39, %p40
      %p43 = scmp.ne.s32.totalorder %s26, %s42
      %p44 = scmp.eq.s32.totalorder %s18, 0
      %p45 = por %p43, %p44
      %s47 = sadd.s32 %s46, 1
      %p50 = scmp.eq.s32.totalorder %s12, 1
      %p51 = scmp.ne.s32.totalorder %s46, %s48
      %p52 = scmp.eq.s32.totalorder %s12, 0
      %p53 = por %p51, %p52
      %p54 = scmp.ne.s32.totalorder %s46, %s48
      %p55 = scmp.eq.s32.totalorder %s17, 1
      %p56 = por %p54, %p55
      %p57 = scmp.ne.s32.totalorder %s48, %s49
      %p58 = scmp.eq.s32.totalorder %s17, 0
      %p59 = por %p57, %p58
      %p60 = scmp.ne.s32.totalorder %s48, %s49
      %p61 = scmp.eq.s32.totalorder %s18, 1
      %p62 = por %p60, %p61
      %p64 = scmp.ne.s32.totalorder %s49, %s63
      %p65 = scmp.eq.s32.totalorder %s18, 0
      %p66 = por %p64, %p65
      %s68 = sadd.s32 %s67, 1
      %p71 = scmp.eq.s32.totalorder %s12, 1
      %p72 = scmp.ne.s32.totalorder %s67, %s69
      %p73 = scmp.eq.s32.totalorder %s12, 0
      %p74 = por %p72, %p73
      %p75 = scmp.ne.s32.totalorder %s67, %s69
      %p76 = scmp.eq.s32.totalorder %s17, 1
      %p77 = por %p75, %p76
      %p78 = scmp.ne.s32.totalorder %s69, %s70
      %p79 = scmp.eq.s32.totalorder %s17, 0
      %p80 = por %p78, %p79
      %p81 = scmp.ne.s32.totalorder %s69, %s70
      %p82 = scmp.eq.s32.totalorder %s18, 1
      %p83 = por %p81, %p82
      %p85 = scmp.ne.s32.totalorder %s70, %s84
      %p86 = scmp.eq.s32.totalorder %s18, 0
      %p87 = por %p85, %p86
      %s88 = ssub.s32 %s12, %s19
      %p89 = scmp.eq.s32.totalorder %s88, 0
      %s91 = sadd.s32 %s90, 1
      %s92 = scalar_select %p89, %s90, %s91
      %p95 = pneg %p89
      %p96 = scmp.eq.s32.totalorder %s12, 1
      %p97 = por %p95, %p96
      %p98 = scmp.ne.s32.totalorder %s90, %s93
      %p99 = scmp.eq.s32.totalorder %s12, 0
      %p100 = por %p98, %p99
      %p101 = scmp.ne.s32.totalorder %s90, %s93
      %p102 = scmp.eq.s32.totalorder %s17, 1
      %p103 = por %p101, %p102
      %p104 = scmp.ne.s32.totalorder %s93, %s94
      %p105 = scmp.eq.s32.totalorder %s17, 0
      %p106 = por %p104, %p105
      %p107 = scmp.ne.s32.totalorder %s93, %s94
      %p108 = scmp.eq.s32.totalorder %s18, 1
      %p109 = por %p107, %p108
      %p111 = scmp.ne.s32.totalorder %s94, %s110
      %p112 = scmp.eq.s32.totalorder %s18, 0
      %p113 = por %p111, %p112
      %p114 = scmp.le.s32.totalorder 1, %s12
      %p115 = scmp.lt.s32.totalorder %s12, 3
      %p116 = pnand %p114, %p115
      %p117 = pneg %p116
      // Predicated region
      $region9: #{_base_encoder_forward.1} parent=5 // pred_check
        _
      $region10: #{_base_encoder_forward.1} parent=5 // pred_check_branch
        %119 = sbr.rel (%p116) target = $region12
      $region11: #{_base_encoder_forward.1} parent=5 // pred_region
        %s120 = ssub.s32 %s12, 1
        // Predicated region
        $region13: #{_base_encoder_forward.1} parent=11 // pred_check
          %p121 = pneg %p59
        $region14: #{_base_encoder_forward.1} parent=11 // pred_check_branch
          %123 = sbr.rel (%p121) target = $region16
        $region15: #{_base_encoder_forward.1} parent=11 // pred_region
          _
        $region16: #{_base_encoder_forward.1} parent=11 // pred_fallthru
          _
        // Predicated region
        $region17: #{_base_encoder_forward.1} parent=11 // pred_check
          %p124 = pneg %p80
        $region18: #{_base_encoder_forward.1} parent=11 // pred_check_branch
          %126 = sbr.rel (%p124) target = $region20
        $region19: #{_base_encoder_forward.1} parent=11 // pred_region
          _
        $region20: #{_base_encoder_forward.1} parent=11 // pred_fallthru
          _
      $region12: #{_base_encoder_forward.1} parent=5 // pred_fallthru
        _
      %p127 = scmp.lt.s32.totalorder %s12, 2
      // Predicated region
      $region21: #{_base_encoder_forward.1} parent=5 // pred_check
        %p128 = pneg %p127
      $region22: #{_base_encoder_forward.1} parent=5 // pred_check_branch
        %130 = sbr.rel (%p128) target = $region24
      $region23: #{_base_encoder_forward.1} parent=5 // pred_region
        // Predicated region
        $region25: #{_base_encoder_forward.1} parent=23 // pred_check
          %p131 = pneg %p32
        $region26: #{_base_encoder_forward.1} parent=23 // pred_check_branch
          %133 = sbr.rel (%p131) target = $region28
        $region27: #{_base_encoder_forward.1} parent=23 // pred_region
          %p134 = scmp.lt.s32.totalorder %s12, 1
          %s135 = scalar_select %p134, %s12, 1
          %s136 = smul.addr %s135, 10
          %s137 = smul.addr %s136, 8
          %s138 = scalar_lea.vmem %s0, %s137
        $region28: #{_base_encoder_forward.1} parent=23 // pred_fallthru
          _
      $region24: #{_base_encoder_forward.1} parent=5 // pred_fallthru
        _
      %p139 = scmp.le.s32.totalorder 1, %s12
      %p140 = scmp.lt.s32.totalorder %s12, 3
      %p141 = pnand %p139, %p140
      %p142 = pneg %p141
      // Predicated region
      $region29: #{_base_encoder_forward.1} parent=5 // pred_check
        _
      $region30: #{_base_encoder_forward.1} parent=5 // pred_check_branch
        %144 = sbr.rel (%p141) target = $region32
      $region31: #{_base_encoder_forward.1} parent=5 // pred_region
        %s145 = ssub.s32 %s12, 1
        %p146 = scmp.lt.s32.totalorder %s17, 1
        %s147 = scalar_select %p146, %s17, 1
        %s148 = smul.addr %s147, 10
        %s149 = smul.addr %s148, 8
        %s150 = scalar_lea.vmem %s0, %s149
        %p151 = pneg %p38
        %p152 = pneg %p35
        %p153 = pneg %p59
        %p154 = pneg %p56
        %p155 = pneg %p80
        %p156 = pneg %p77
        %p157 = pneg %p106
        %p158 = pneg %p103
        %s159 = sand.u32 %s93, 1
        %s160 = scalar_lea.sflag [#allocation3], %s159
        %s161 = sand.u32 %s93, 1
        %s162 = scalar_lea.vmem [#allocation2], %s161
        %p163 = scmp.lt.s32.totalorder %s17, 1
        %s164 = scalar_select %p163, %s17, 1
        %s165 = smul.addr %s164, 10
        %s166 = smul.addr %s165, 8
        %s167 = scalar_lea.vmem %s0, %s166
        %v168 = vld [vmem:[%s167] sm:$0xff]
        %v169 = vld [vmem:[%s167 + $0x8] sm:$0xff]
        %v170 = vld [vmem:[%s167 + $0x10] sm:$0xff]
        %v171 = vld [vmem:[%s167 + $0x18] sm:$0xff]
        %v172 = vld [vmem:[%s167 + $0x20] sm:$0xff]
        %v173 = vld [vmem:[%s167 + $0x28] sm:$0xff]
        %v174 = vld [vmem:[%s167 + $0x30] sm:$0xff]
        %v175 = vld [vmem:[%s167 + $0x38] sm:$0xff]
        %v176 = vld [vmem:[%s167 + $0x40] sm:$0xf]
        %v177 = vld [vmem:[%s167 + $0x48] sm:$0xf]
        %v178 = vld [vmem:[%s1] sm:$0xff]
        %v179 = vld [vmem:[%s1] sm:$0x1]
        %181 = vset.pattern.permute.xlu0 36
        %182 = vperm.xlu0 %181, %v178
        %v183 = vpop.permute.xlu0 %182
        %vm185 = vcmask 293888
        %v186 = vsel %vm185, %v178, 0
        %vm188 = vcmask 1043456
        %v190 = vsel %vm188, %v176, 0
        %v193 = vsel %vm188, %v177, 0
        %195 = vmatprep.subr.mxu0 0.0
        %196 = vmatpush1.msra.mxu0 0.0
        %197 = vmatprep.subr.mxu0 0.0
        %198 = vmatpush1.msra.mxu0 0.0
        %199 = vmatprep.subr.mxu0 0.0
        %200 = vmatpush1.msra.mxu0 0.0
        %201 = vmatprep.subr.mxu0 0.0
        %202 = vmatpush1.msra.mxu0 0.0
        %203 = vmatprep.subr.mxu0 0.0
        %204 = vmatpush1.msra.mxu0 0.0
        %205 = vmatprep.subr.mxu0 0.0
        %206 = vmatpush1.msra.mxu0 0.0
        %207 = vmatprep.subr.mxu0 0.0
        %208 = vmatpush1.msra.mxu0 0.0
        %209 = vmatprep.subr.mxu0 0.0
        %210 = vmatpush1.msra.mxu0 0.0
        %211 = vmatprep.subr.mxu0 0.0
        %212 = vmatpush1.msra.mxu0 0.0
        %213 = vmatprep.subr.mxu0 0.0
        %214 = vmatpush1.msra.mxu0 0.0
        %215 = vmatprep.subr.mxu0 0.0
        %216 = vmatpush1.msra.mxu0 0.0
        %217 = vmatprep.subr.mxu0 %v193
        %218 = vmatpush1.msra.mxu0 %v190
        %219 = vmatprep.subr.mxu0 %v175
        %220 = vmatpush1.msra.mxu0 %v174
        %221 = vmatprep.subr.mxu0 %v173
        %222 = vmatpush1.msra.mxu0 %v172
        %223 = vmatprep.subr.mxu0 %v171
        %224 = vmatpush1.msra.mxu0 %v170
        %225 = vmatprep.subr.mxu0 %v169
        %226 = vmatpush1.msra.mxu0 %v168
        %227 = vmatprep.subr.mxu0 0.0
        %228 = vmatpush2.msra.mxu0 0.0
        %229 = vmatprep.subr.mxu0 0.0
        %230 = vmatpush2.msra.mxu0 0.0
        %231 = vmatprep.subr.mxu0 0.0
        %232 = vmatpush2.msra.mxu0 0.0
        %233 = vmatprep.subr.mxu0 0.0
        %234 = vmatpush2.msra.mxu0 0.0
        %235 = vmatprep.subr.mxu0 0.0
        %236 = vmatpush2.msra.mxu0 0.0
        %237 = vmatprep.subr.mxu0 0.0
        %238 = vmatpush2.msra.mxu0 0.0
        %239 = vmatprep.subr.mxu0 0.0
        %240 = vmatpush2.msra.mxu0 0.0
        %241 = vmatprep.subr.mxu0 0.0
        %242 = vmatpush2.msra.mxu0 0.0
        %243 = vmatprep.subr.mxu0 0.0
        %244 = vmatpush2.msra.mxu0 0.0
        %245 = vmatprep.subr.mxu0 0.0
        %246 = vmatpush2.msra.mxu0 0.0
        %247 = vmatprep.subr.mxu0 0.0
        %248 = vmatpush2.msra.mxu0 0.0
        %249 = vmatprep.subr.mxu0 0.0
        %250 = vmatpush2.msra.mxu0 0.0
        %251 = vmatprep.subr.mxu0 0.0
        %252 = vmatpush2.msra.mxu0 0.0
        %253 = vmatprep.subr.mxu0 0.0
        %254 = vmatpush2.msra.mxu0 0.0
        %255 = vmatprep.subr.mxu0 0.0
        %256 = vmatpush2.msra.mxu0 0.0
        %257 = vmatprep.subr.mxu0 0.0
        %258 = vmatpush2.msra.mxu0 0.0
        %259 = vmatprep.mubr.f32.mxu0 0.0
        %260 = vmatmul.mubr.f32.gmra.mxu0 %v186
        %v261 = vpop.f32.mrf.mxu0
        %v262 = vadd.f32 %v183, %v261
        %v263 = vpop.f32.mrf.mxu0
        %v264 = vadd.f32 %v183, %v263
        %265 = vdwg.mxu0
        %v266 = vmax.f32 %v262, 0.0
        %v267 = vmax.f32 %v264, 0.0
        %v270 = vcombine.low %v266, %v267
        %v271 = vcombine.high %v266, %v267
        %v275 = vunpack.c.l.s4 1935823168
        %v276 = vunpack.c.0.s8 %v275
        %v277 = vlaneseq
        %v278 = vshrl.u32 %v277, 7
        %v279 = vsub.s32 %v276, %v278
        %v280 = vrot.slane %v270, %v279
        %v282 = vunpack.c.l.s4 1935823168
        %v283 = vunpack.c.0.s8 %v282
        %v284 = vlaneseq
        %v285 = vshrl.u32 %v284, 7
        %v286 = vsub.s32 %v283, %v285
        %v287 = vrot.slane %v271, %v286
        %v288 = vld [vmem:[%s2] sm:$0xff]
        %v289 = vld [vmem:[%s2 + $0x8] sm:$0xff]
        %v290 = vld [vmem:[%s2 + $0x10] sm:$0xff]
        %v291 = vld [vmem:[%s2 + $0x18] sm:$0xff]
        %v292 = vld [vmem:[%s2 + $0x20] sm:$0xff]
        %v293 = vld [vmem:[%s2 + $0x28] sm:$0xff]
        %v294 = vld [vmem:[%s2 + $0x30] sm:$0xff]
        %v295 = vld [vmem:[%s2 + $0x38] sm:$0xff]
        %v296 = vld [vmem:[%s2 + $0x40] sm:$0xff]
        %v297 = vld [vmem:[%s2 + $0x48] sm:$0xff]
        %v298 = vld [vmem:[%s2 + $0x50] sm:$0xff]
        %v299 = vld [vmem:[%s2 + $0x58] sm:$0xff]
        %v300 = vld [vmem:[%s2 + $0x60] sm:$0xff]
        %v301 = vld [vmem:[%s2 + $0x68] sm:$0xff]
        %v302 = vld [vmem:[%s2 + $0x70] sm:$0xff]
        %v303 = vld [vmem:[%s2 + $0x78] sm:$0xff]
        %v304 = vld [vmem:[%s2 + $0x80] sm:$0xff]
        %v305 = vld [vmem:[%s2 + $0x88] sm:$0xff]
        %v306 = vld [vmem:[%s2 + $0x90] sm:$0xff]
        %v307 = vld [vmem:[%s2 + $0x98] sm:$0xff]
        %v308 = vld [vmem:[%s2 + $0xa0] sm:$0xff]
        %v309 = vld [vmem:[%s2 + $0xa8] sm:$0xff]
        %v310 = vld [vmem:[%s2 + $0xb0] sm:$0xff]
        %v311 = vld [vmem:[%s2 + $0xb8] sm:$0xff]
        %v312 = vld [vmem:[%s2 + $0xc0] sm:$0xff]
        %v313 = vld [vmem:[%s2 + $0xc8] sm:$0xff]
        %v314 = vld [vmem:[%s2 + $0xd0] sm:$0xff]
        %v315 = vld [vmem:[%s2 + $0xd8] sm:$0xff]
        %v316 = vld [vmem:[%s2 + $0xe0] sm:$0xff]
        %v317 = vld [vmem:[%s2 + $0xe8] sm:$0xff]
        %v318 = vld [vmem:[%s2 + $0xf0] sm:$0xff]
        %v319 = vld [vmem:[%s2 + $0xf8] sm:$0xff]
        %v320 = vld [vmem:[%s2 + $0x100] sm:$0xff]
        %v321 = vld [vmem:[%s2 + $0x108] sm:$0xff]
        %v322 = vld [vmem:[%s2 + $0x110] sm:$0xff]
        %v323 = vld [vmem:[%s2 + $0x118] sm:$0xff]
        %v324 = vld [vmem:[%s2 + $0x120] sm:$0xff]
        %v325 = vld [vmem:[%s2 + $0x128] sm:$0xff]
        %v326 = vld [vmem:[%s2 + $0x130] sm:$0xff]
        %v327 = vld [vmem:[%s2 + $0x138] sm:$0xff]
        %v328 = vld [vmem:[%s2 + $0x140] sm:$0xff]
        %v329 = vld [vmem:[%s2 + $0x148] sm:$0xff]
        %v330 = vld [vmem:[%s2 + $0x150] sm:$0xff]
        %v331 = vld [vmem:[%s2 + $0x158] sm:$0xff]
        %v332 = vld [vmem:[%s2 + $0x160] sm:$0xff]
        %v333 = vld [vmem:[%s2 + $0x168] sm:$0xff]
        %v334 = vld [vmem:[%s2 + $0x170] sm:$0xff]
        %v335 = vld [vmem:[%s2 + $0x178] sm:$0xff]
        %v336 = vld [vmem:[%s2 + $0x180] sm:$0xff]
        %v337 = vld [vmem:[%s2 + $0x188] sm:$0xff]
        %v338 = vld [vmem:[%s2 + $0x190] sm:$0xff]
        %v339 = vld [vmem:[%s2 + $0x198] sm:$0xff]
        %v340 = vld [vmem:[%s2 + $0x1a0] sm:$0xff]
        %v341 = vld [vmem:[%s2 + $0x1a8] sm:$0xff]
        %v342 = vld [vmem:[%s2 + $0x1b0] sm:$0xff]
        %v343 = vld [vmem:[%s2 + $0x1b8] sm:$0xff]
        %v344 = vld [vmem:[%s2 + $0x1c0] sm:$0xff]
        %v345 = vld [vmem:[%s2 + $0x1c8] sm:$0xff]
        %v346 = vld [vmem:[%s2 + $0x1d0] sm:$0xff]
        %v347 = vld [vmem:[%s2 + $0x1d8] sm:$0xff]
        %v348 = vld [vmem:[%s2 + $0x1e0] sm:$0xff]
        %v349 = vld [vmem:[%s2 + $0x1e8] sm:$0xff]
        %v350 = vld [vmem:[%s2 + $0x1f0] sm:$0xff]
        %v351 = vld [vmem:[%s2 + $0x1f8] sm:$0xff]
        %v352 = vld [vmem:[%s2 + $0x200] sm:$0xff]
        %v353 = vld [vmem:[%s2 + $0x208] sm:$0xff]
        %v354 = vld [vmem:[%s2 + $0x210] sm:$0xff]
        %v355 = vld [vmem:[%s2 + $0x218] sm:$0xff]
        %v356 = vld [vmem:[%s2 + $0x220] sm:$0xff]
        %v357 = vld [vmem:[%s2 + $0x228] sm:$0xff]
        %v358 = vld [vmem:[%s2 + $0x230] sm:$0xff]
        %v359 = vld [vmem:[%s2 + $0x238] sm:$0xff]
        %v360 = vld [vmem:[%s2 + $0x240] sm:$0xff]
        %v361 = vld [vmem:[%s2 + $0x248] sm:$0xff]
        %v362 = vld [vmem:[%s2 + $0x250] sm:$0xff]
        %v363 = vld [vmem:[%s2 + $0x258] sm:$0xff]
        %v364 = vld [vmem:[%s2 + $0x260] sm:$0xff]
        %v365 = vld [vmem:[%s2 + $0x268] sm:$0xff]
        %v366 = vld [vmem:[%s2 + $0x270] sm:$0xff]
        %v367 = vld [vmem:[%s2 + $0x278] sm:$0xff]
        %v368 = vld [vmem:[%s2 + $0x280] sm:$0xff]
        %v369 = vld [vmem:[%s2 + $0x288] sm:$0xff]
        %v370 = vld [vmem:[%s2 + $0x290] sm:$0xff]
        %v371 = vld [vmem:[%s2 + $0x298] sm:$0xff]
        %v372 = vld [vmem:[%s2 + $0x2a0] sm:$0xff]
        %v373 = vld [vmem:[%s2 + $0x2a8] sm:$0xff]
        %v374 = vld [vmem:[%s2 + $0x2b0] sm:$0xff]
        %v375 = vld [vmem:[%s2 + $0x2b8] sm:$0xff]
        %v376 = vld [vmem:[%s2 + $0x2c0] sm:$0xff]
        %v377 = vld [vmem:[%s2 + $0x2c8] sm:$0xff]
        %v378 = vld [vmem:[%s2 + $0x2d0] sm:$0xff]
        %v379 = vld [vmem:[%s2 + $0x2d8] sm:$0xff]
        %v380 = vld [vmem:[%s2 + $0x2e0] sm:$0xff]
        %v381 = vld [vmem:[%s2 + $0x2e8] sm:$0xff]
        %v382 = vld [vmem:[%s2 + $0x2f0] sm:$0xff]
        %v383 = vld [vmem:[%s2 + $0x2f8] sm:$0xff]
        %v384 = vld [vmem:[%s2 + $0x300] sm:$0xff]
        %v385 = vld [vmem:[%s2 + $0x308] sm:$0xff]
        %v386 = vld [vmem:[%s2 + $0x310] sm:$0xff]
        %v387 = vld [vmem:[%s2 + $0x318] sm:$0xff]
        %v388 = vld [vmem:[%s2 + $0x320] sm:$0xff]
        %v389 = vld [vmem:[%s2 + $0x328] sm:$0xff]
        %v390 = vld [vmem:[%s2 + $0x330] sm:$0xff]
        %v391 = vld [vmem:[%s2 + $0x338] sm:$0xff]
        %v392 = vld [vmem:[%s2 + $0x340] sm:$0xff]
        %v393 = vld [vmem:[%s2 + $0x348] sm:$0xff]
        %v394 = vld [vmem:[%s2 + $0x350] sm:$0xff]
        %v395 = vld [vmem:[%s2 + $0x358] sm:$0xff]
        %v396 = vld [vmem:[%s2 + $0x360] sm:$0xff]
        %v397 = vld [vmem:[%s2 + $0x368] sm:$0xff]
        %v398 = vld [vmem:[%s2 + $0x370] sm:$0xff]
        %v399 = vld [vmem:[%s2 + $0x378] sm:$0xff]
        %v400 = vld [vmem:[%s2 + $0x380] sm:$0xff]
        %v401 = vld [vmem:[%s2 + $0x388] sm:$0xff]
        %v402 = vld [vmem:[%s2 + $0x390] sm:$0xff]
        %v403 = vld [vmem:[%s2 + $0x398] sm:$0xff]
        %v404 = vld [vmem:[%s2 + $0x3a0] sm:$0xff]
        %v405 = vld [vmem:[%s2 + $0x3a8] sm:$0xff]
        %v406 = vld [vmem:[%s2 + $0x3b0] sm:$0xff]
        %v407 = vld [vmem:[%s2 + $0x3b8] sm:$0xff]
        %v408 = vld [vmem:[%s2 + $0x3c0] sm:$0xff]
        %v409 = vld [vmem:[%s2 + $0x3c8] sm:$0xff]
        %v410 = vld [vmem:[%s2 + $0x3d0] sm:$0xff]
        %v411 = vld [vmem:[%s2 + $0x3d8] sm:$0xff]
        %v412 = vld [vmem:[%s2 + $0x3e0] sm:$0xff]
        %v413 = vld [vmem:[%s2 + $0x3e8] sm:$0xff]
        %v414 = vld [vmem:[%s2 + $0x3f0] sm:$0xff]
        %v415 = vld [vmem:[%s2 + $0x3f8] sm:$0xff]
        %v416 = vld [vmem:[%s2 + $0x400] sm:$0xff]
        %v417 = vld [vmem:[%s2 + $0x408] sm:$0xff]
        %v418 = vld [vmem:[%s2 + $0x410] sm:$0xff]
        %v419 = vld [vmem:[%s2 + $0x418] sm:$0xff]
        %v420 = vld [vmem:[%s2 + $0x420] sm:$0xff]
        %v421 = vld [vmem:[%s2 + $0x428] sm:$0xff]
        %v422 = vld [vmem:[%s2 + $0x430] sm:$0xff]
        %v423 = vld [vmem:[%s2 + $0x438] sm:$0xff]
        %v424 = vld [vmem:[%s2 + $0x440] sm:$0xff]
        %v425 = vld [vmem:[%s2 + $0x448] sm:$0xff]
        %v426 = vld [vmem:[%s2 + $0x450] sm:$0xff]
        %v427 = vld [vmem:[%s2 + $0x458] sm:$0xff]
        %v428 = vld [vmem:[%s2 + $0x460] sm:$0xff]
        %v429 = vld [vmem:[%s2 + $0x468] sm:$0xff]
        %v430 = vld [vmem:[%s2 + $0x470] sm:$0xff]
        %v431 = vld [vmem:[%s2 + $0x478] sm:$0xff]
        %v432 = vld [vmem:[%s2 + $0x480] sm:$0xff]
        %v433 = vld [vmem:[%s2 + $0x488] sm:$0xff]
        %v434 = vld [vmem:[%s2 + $0x490] sm:$0xff]
        %v435 = vld [vmem:[%s2 + $0x498] sm:$0xff]
        %v436 = vld [vmem:[%s2 + $0x4a0] sm:$0xff]
        %v437 = vld [vmem:[%s2 + $0x4a8] sm:$0xff]
        %v438 = vld [vmem:[%s2 + $0x4b0] sm:$0xff]
        %v439 = vld [vmem:[%s2 + $0x4b8] sm:$0xff]
        %v440 = vld [vmem:[%s2 + $0x4c0] sm:$0xff]
        %v441 = vld [vmem:[%s2 + $0x4c8] sm:$0xff]
        %v442 = vld [vmem:[%s2 + $0x4d0] sm:$0xff]
        %v443 = vld [vmem:[%s2 + $0x4d8] sm:$0xff]
        %v444 = vld [vmem:[%s2 + $0x4e0] sm:$0xff]
        %v445 = vld [vmem:[%s2 + $0x4e8] sm:$0xff]
        %v446 = vld [vmem:[%s2 + $0x4f0] sm:$0xff]
        %v447 = vld [vmem:[%s2 + $0x4f8] sm:$0xff]
        %v448 = vld [vmem:[%s2 + $0x500] sm:$0xff]
        %v449 = vld [vmem:[%s2 + $0x508] sm:$0xff]
        %v450 = vld [vmem:[%s2 + $0x510] sm:$0xff]
        %v451 = vld [vmem:[%s2 + $0x518] sm:$0xff]
        %v452 = vld [vmem:[%s2 + $0x520] sm:$0xff]
        %v453 = vld [vmem:[%s2 + $0x528] sm:$0xff]
        %v454 = vld [vmem:[%s2 + $0x530] sm:$0xff]
        %v455 = vld [vmem:[%s2 + $0x538] sm:$0xff]
        %v456 = vld [vmem:[%s2 + $0x540] sm:$0xff]
        %v457 = vld [vmem:[%s2 + $0x548] sm:$0xff]
        %v458 = vld [vmem:[%s2 + $0x550] sm:$0xff]
        %v459 = vld [vmem:[%s2 + $0x558] sm:$0xff]
        %v460 = vld [vmem:[%s2 + $0x560] sm:$0xff]
        %v461 = vld [vmem:[%s2 + $0x568] sm:$0xff]
        %v462 = vld [vmem:[%s2 + $0x570] sm:$0xff]
        %v463 = vld [vmem:[%s2 + $0x578] sm:$0xff]
        %v464 = vld [vmem:[%s2 + $0x580] sm:$0xff]
        %v465 = vld [vmem:[%s2 + $0x588] sm:$0xff]
        %v466 = vld [vmem:[%s2 + $0x590] sm:$0xff]
        %v467 = vld [vmem:[%s2 + $0x598] sm:$0xff]
        %v468 = vld [vmem:[%s2 + $0x5a0] sm:$0xff]
        %v469 = vld [vmem:[%s2 + $0x5a8] sm:$0xff]
        %v470 = vld [vmem:[%s2 + $0x5b0] sm:$0xff]
        %v471 = vld [vmem:[%s2 + $0x5b8] sm:$0xff]
        %v472 = vld [vmem:[%s2 + $0x5c0] sm:$0xff]
        %v473 = vld [vmem:[%s2 + $0x5c8] sm:$0xff]
        %v474 = vld [vmem:[%s2 + $0x5d0] sm:$0xff]
        %v475 = vld [vmem:[%s2 + $0x5d8] sm:$0xff]
        %v476 = vld [vmem:[%s2 + $0x5e0] sm:$0xff]
        %v477 = vld [vmem:[%s2 + $0x5e8] sm:$0xff]
        %v478 = vld [vmem:[%s2 + $0x5f0] sm:$0xff]
        %v479 = vld [vmem:[%s2 + $0x5f8] sm:$0xff]
        %v480 = vld [vmem:[%s2 + $0x600] sm:$0xff]
        %v481 = vld [vmem:[%s2 + $0x608] sm:$0xff]
        %v482 = vld [vmem:[%s2 + $0x610] sm:$0xff]
        %v483 = vld [vmem:[%s2 + $0x618] sm:$0xff]
        %v484 = vld [vmem:[%s2 + $0x620] sm:$0xff]
        %v485 = vld [vmem:[%s2 + $0x628] sm:$0xff]
        %v486 = vld [vmem:[%s2 + $0x630] sm:$0xff]
        %v487 = vld [vmem:[%s2 + $0x638] sm:$0xff]
        %v488 = vld [vmem:[%s2 + $0x640] sm:$0xff]
        %v489 = vld [vmem:[%s2 + $0x648] sm:$0xff]
        %v490 = vld [vmem:[%s2 + $0x650] sm:$0xff]
        %v491 = vld [vmem:[%s2 + $0x658] sm:$0xff]
        %v492 = vld [vmem:[%s2 + $0x660] sm:$0xff]
        %v493 = vld [vmem:[%s2 + $0x668] sm:$0xff]
        %v494 = vld [vmem:[%s2 + $0x670] sm:$0xff]
        %v495 = vld [vmem:[%s2 + $0x678] sm:$0xff]
        %v496 = vld [vmem:[%s2 + $0x680] sm:$0xff]
        %v497 = vld [vmem:[%s2 + $0x688] sm:$0xff]
        %v498 = vld [vmem:[%s2 + $0x690] sm:$0xff]
        %v499 = vld [vmem:[%s2 + $0x698] sm:$0xff]
        %v500 = vld [vmem:[%s2 + $0x6a0] sm:$0xff]
        %v501 = vld [vmem:[%s2 + $0x6a8] sm:$0xff]
        %v502 = vld [vmem:[%s2 + $0x6b0] sm:$0xff]
        %v503 = vld [vmem:[%s2 + $0x6b8] sm:$0xff]
        %v504 = vld [vmem:[%s2 + $0x6c0] sm:$0xff]
        %v505 = vld [vmem:[%s2 + $0x6c8] sm:$0xff]
        %v506 = vld [vmem:[%s2 + $0x6d0] sm:$0xff]
        %v507 = vld [vmem:[%s2 + $0x6d8] sm:$0xff]
        %v508 = vld [vmem:[%s2 + $0x6e0] sm:$0xff]
        %v509 = vld [vmem:[%s2 + $0x6e8] sm:$0xff]
        %v510 = vld [vmem:[%s2 + $0x6f0] sm:$0xff]
        %v511 = vld [vmem:[%s2 + $0x6f8] sm:$0xff]
        %v512 = vld [vmem:[%s2 + $0x700] sm:$0xff]
        %v513 = vld [vmem:[%s2 + $0x708] sm:$0xff]
        %v514 = vld [vmem:[%s2 + $0x710] sm:$0xff]
        %v515 = vld [vmem:[%s2 + $0x718] sm:$0xff]
        %v516 = vld [vmem:[%s2 + $0x720] sm:$0xff]
        %v517 = vld [vmem:[%s2 + $0x728] sm:$0xff]
        %v518 = vld [vmem:[%s2 + $0x730] sm:$0xff]
        %v519 = vld [vmem:[%s2 + $0x738] sm:$0xff]
        %v520 = vld [vmem:[%s2 + $0x740] sm:$0xff]
        %v521 = vld [vmem:[%s2 + $0x748] sm:$0xff]
        %v522 = vld [vmem:[%s2 + $0x750] sm:$0xff]
        %v523 = vld [vmem:[%s2 + $0x758] sm:$0xff]
        %v524 = vld [vmem:[%s2 + $0x760] sm:$0xff]
        %v525 = vld [vmem:[%s2 + $0x768] sm:$0xff]
        %v526 = vld [vmem:[%s2 + $0x770] sm:$0xff]
        %v527 = vld [vmem:[%s2 + $0x778] sm:$0xff]
        %v528 = vld [vmem:[%s2 + $0x780] sm:$0xff]
        %v529 = vld [vmem:[%s2 + $0x788] sm:$0xff]
        %v530 = vld [vmem:[%s2 + $0x790] sm:$0xff]
        %v531 = vld [vmem:[%s2 + $0x798] sm:$0xff]
        %v532 = vld [vmem:[%s2 + $0x7a0] sm:$0xff]
        %v533 = vld [vmem:[%s2 + $0x7a8] sm:$0xff]
        %v534 = vld [vmem:[%s2 + $0x7b0] sm:$0xff]
        %v535 = vld [vmem:[%s2 + $0x7b8] sm:$0xff]
        %v536 = vld [vmem:[%s2 + $0x7c0] sm:$0xff]
        %v537 = vld [vmem:[%s2 + $0x7c8] sm:$0xff]
        %v538 = vld [vmem:[%s2 + $0x7d0] sm:$0xff]
        %v539 = vld [vmem:[%s2 + $0x7d8] sm:$0xff]
        %v540 = vld [vmem:[%s2 + $0x7e0] sm:$0xff]
        %v541 = vld [vmem:[%s2 + $0x7e8] sm:$0xff]
        %v542 = vld [vmem:[%s2 + $0x7f0] sm:$0xff]
        %v543 = vld [vmem:[%s2 + $0x7f8] sm:$0xff]
        %v546 = vlaneseq
        %v547 = vshrl.u32 %v546, 7
        %v548 = vsub.s32 0, %v547
        %v549 = vrot.slane %v280, %v548
        %v550 = vlaneseq
        %v551 = vshrl.u32 %v550, 7
        %v552 = vsub.s32 1, %v551
        %v553 = vrot.slane %v280, %v552
        %v554 = vlaneseq
        %v555 = vshrl.u32 %v554, 7
        %v556 = vsub.s32 2, %v555
        %v557 = vrot.slane %v280, %v556
        %v558 = vlaneseq
        %v559 = vshrl.u32 %v558, 7
        %v560 = vsub.s32 3, %v559
        %v561 = vrot.slane %v280, %v560
        %v562 = vlaneseq
        %v563 = vshrl.u32 %v562, 7
        %v564 = vsub.s32 4, %v563
        %v565 = vrot.slane %v280, %v564
        %v566 = vlaneseq
        %v567 = vshrl.u32 %v566, 7
        %v568 = vsub.s32 5, %v567
        %v569 = vrot.slane %v280, %v568
        %v570 = vlaneseq
        %v571 = vshrl.u32 %v570, 7
        %v572 = vsub.s32 6, %v571
        %v573 = vrot.slane %v280, %v572
        %v574 = vlaneseq
        %v575 = vshrl.u32 %v574, 7
        %v576 = vsub.s32 7, %v575
        %v577 = vrot.slane %v280, %v576
        %v578 = vlaneseq
        %v579 = vshrl.u32 %v578, 7
        %v580 = vsub.s32 0, %v579
        %v581 = vrot.slane %v287, %v580
        %v582 = vlaneseq
        %v583 = vshrl.u32 %v582, 7
        %v584 = vsub.s32 1, %v583
        %v585 = vrot.slane %v287, %v584
        %v586 = vlaneseq
        %v587 = vshrl.u32 %v586, 7
        %v588 = vsub.s32 2, %v587
        %v589 = vrot.slane %v287, %v588
        %v590 = vlaneseq
        %v591 = vshrl.u32 %v590, 7
        %v592 = vsub.s32 3, %v591
        %v593 = vrot.slane %v287, %v592
        %v594 = vlaneseq
        %v595 = vshrl.u32 %v594, 7
        %v596 = vsub.s32 4, %v595
        %v597 = vrot.slane %v287, %v596
        %v598 = vlaneseq
        %v599 = vshrl.u32 %v598, 7
        %v600 = vsub.s32 5, %v599
        %v601 = vrot.slane %v287, %v600
        %v602 = vlaneseq
        %v603 = vshrl.u32 %v602, 7
        %v604 = vsub.s32 6, %v603
        %v605 = vrot.slane %v287, %v604
        %v606 = vlaneseq
        %v607 = vshrl.u32 %v606, 7
        %v608 = vsub.s32 7, %v607
        %v609 = vrot.slane %v287, %v608
        %627 = vrot.lane.b32.xlu0 %v179, 32
        %v628 = vpop.permute.xlu0 %627
        %630 = vmatprep.subr.mxu0 0.0
        %631 = vmatpush1.msra.mxu0 %v303
        %632 = vmatprep.subr.mxu0 0.0
        %633 = vmatpush1.msra.mxu0 %v302
        %634 = vmatprep.subr.mxu0 0.0
        %635 = vmatpush1.msra.mxu0 %v301
        %636 = vmatprep.subr.mxu0 0.0
        %637 = vmatpush1.msra.mxu0 %v300
        %638 = vmatprep.subr.mxu0 0.0
        %639 = vmatpush1.msra.mxu0 %v299
        %640 = vmatprep.subr.mxu0 0.0
        %641 = vmatpush1.msra.mxu0 %v298
        %642 = vmatprep.subr.mxu0 0.0
        %643 = vmatpush1.msra.mxu0 %v297
        %644 = vmatprep.subr.mxu0 0.0
        %645 = vmatpush1.msra.mxu0 %v296
        %646 = vmatprep.subr.mxu0 0.0
        %647 = vmatpush1.msra.mxu0 %v295
        %648 = vmatprep.subr.mxu0 0.0
        %649 = vmatpush1.msra.mxu0 %v294
        %650 = vmatprep.subr.mxu0 0.0
        %651 = vmatpush1.msra.mxu0 %v293
        %652 = vmatprep.subr.mxu0 0.0
        %653 = vmatpush1.msra.mxu0 %v292
        %654 = vmatprep.subr.mxu0 0.0
        %655 = vmatpush1.msra.mxu0 %v291
        %656 = vmatprep.subr.mxu0 0.0
        %657 = vmatpush1.msra.mxu0 %v290
        %658 = vmatprep.subr.mxu0 0.0
        %659 = vmatpush1.msra.mxu0 %v289
        %660 = vmatprep.subr.mxu0 0.0
        %661 = vmatpush1.msra.mxu0 %v288
        %662 = vmatprep.subr.mxu0 0.0
        %663 = vmatpush2.msra.mxu0 %v319
        %664 = vmatprep.subr.mxu0 0.0
        %665 = vmatpush2.msra.mxu0 %v318
        %666 = vmatprep.subr.mxu0 0.0
        %667 = vmatpush2.msra.mxu0 %v317
        %668 = vmatprep.subr.mxu0 0.0
        %669 = vmatpush2.msra.mxu0 %v316
        %670 = vmatprep.subr.mxu0 0.0
        %671 = vmatpush2.msra.mxu0 %v315
        %672 = vmatprep.subr.mxu0 0.0
        %673 = vmatpush2.msra.mxu0 %v314
        %674 = vmatprep.subr.mxu0 0.0
        %675 = vmatpush2.msra.mxu0 %v313
        %676 = vmatprep.subr.mxu0 0.0
        %677 = vmatpush2.msra.mxu0 %v312
        %678 = vmatprep.subr.mxu0 0.0
        %679 = vmatpush2.msra.mxu0 %v311
        %680 = vmatprep.subr.mxu0 0.0
        %681 = vmatpush2.msra.mxu0 %v310
        %682 = vmatprep.subr.mxu0 0.0
        %683 = vmatpush2.msra.mxu0 %v309
        %684 = vmatprep.subr.mxu0 0.0
        %685 = vmatpush2.msra.mxu0 %v308
        %686 = vmatprep.subr.mxu0 0.0
        %687 = vmatpush2.msra.mxu0 %v307
        %688 = vmatprep.subr.mxu0 0.0
        %689 = vmatpush2.msra.mxu0 %v306
        %690 = vmatprep.subr.mxu0 0.0
        %691 = vmatpush2.msra.mxu0 %v305
        %692 = vmatprep.subr.mxu0 0.0
        %693 = vmatpush2.msra.mxu0 %v304
        %694 = vmatprep.mubr.f32.mxu0 %v553
        %695 = vmatmul.mubr.f32.gmra.mxu0 %v549
        %v696 = vpop.f32.mrf.mxu0
        %v697 = vadd.f32 %v628, %v696
        %v698 = vpop.f32.mrf.mxu0
        %699 = vdwg.mxu0
        %700 = vmatprep.subr.mxu0 0.0
        %701 = vmatpush1.msra.mxu0 %v335
        %702 = vmatprep.subr.mxu0 0.0
        %703 = vmatpush1.msra.mxu0 %v334
        %704 = vmatprep.subr.mxu0 0.0
        %705 = vmatpush1.msra.mxu0 %v333
        %706 = vmatprep.subr.mxu0 0.0
        %707 = vmatpush1.msra.mxu0 %v332
        %708 = vmatprep.subr.mxu0 0.0
        %709 = vmatpush1.msra.mxu0 %v331
        %710 = vmatprep.subr.mxu0 0.0
        %711 = vmatpush1.msra.mxu0 %v330
        %712 = vmatprep.subr.mxu0 0.0
        %713 = vmatpush1.msra.mxu0 %v329
        %714 = vmatprep.subr.mxu0 0.0
        %715 = vmatpush1.msra.mxu0 %v328
        %716 = vmatprep.subr.mxu0 0.0
        %717 = vmatpush1.msra.mxu0 %v327
        %718 = vmatprep.subr.mxu0 0.0
        %719 = vmatpush1.msra.mxu0 %v326
        %720 = vmatprep.subr.mxu0 0.0
        %721 = vmatpush1.msra.mxu0 %v325
        %722 = vmatprep.subr.mxu0 0.0
        %723 = vmatpush1.msra.mxu0 %v324
        %724 = vmatprep.subr.mxu0 0.0
        %725 = vmatpush1.msra.mxu0 %v323
        %726 = vmatprep.subr.mxu0 0.0
        %727 = vmatpush1.msra.mxu0 %v322
        %728 = vmatprep.subr.mxu0 0.0
        %729 = vmatpush1.msra.mxu0 %v321
        %730 = vmatprep.subr.mxu0 0.0
        %731 = vmatpush1.msra.mxu0 %v320
        %732 = vmatprep.subr.mxu0 0.0
        %733 = vmatpush2.msra.mxu0 %v351
        %734 = vmatprep.subr.mxu0 0.0
        %735 = vmatpush2.msra.mxu0 %v350
        %736 = vmatprep.subr.mxu0 0.0
        %737 = vmatpush2.msra.mxu0 %v349
        %738 = vmatprep.subr.mxu0 0.0
        %739 = vmatpush2.msra.mxu0 %v348
        %740 = vmatprep.subr.mxu0 0.0
        %741 = vmatpush2.msra.mxu0 %v347
        %742 = vmatprep.subr.mxu0 0.0
        %743 = vmatpush2.msra.mxu0 %v346
        %744 = vmatprep.subr.mxu0 0.0
        %745 = vmatpush2.msra.mxu0 %v345
        %746 = vmatprep.subr.mxu0 0.0
        %747 = vmatpush2.msra.mxu0 %v344
        %748 = vmatprep.subr.mxu0 0.0
        %749 = vmatpush2.msra.mxu0 %v343
        %750 = vmatprep.subr.mxu0 0.0
        %751 = vmatpush2.msra.mxu0 %v342
        %752 = vmatprep.subr.mxu0 0.0
        %753 = vmatpush2.msra.mxu0 %v341
        %754 = vmatprep.subr.mxu0 0.0
        %755 = vmatpush2.msra.mxu0 %v340
        %756 = vmatprep.subr.mxu0 0.0
        %757 = vmatpush2.msra.mxu0 %v339
        %758 = vmatprep.subr.mxu0 0.0
        %759 = vmatpush2.msra.mxu0 %v338
        %760 = vmatprep.subr.mxu0 0.0
        %761 = vmatpush2.msra.mxu0 %v337
        %762 = vmatprep.subr.mxu0 0.0
        %763 = vmatpush2.msra.mxu0 %v336
        %764 = vmatprep.mubr.f32.mxu0 %v561
        %765 = vmatmul.mubr.f32.gmra.mxu0 %v557
        %v766 = vpop.f32.mrf.mxu0
        %v767 = vadd.f32 %v697, %v766
        %v768 = vpop.f32.mrf.mxu0
        %769 = vdwg.mxu0
        %770 = vmatprep.subr.mxu0 0.0
        %771 = vmatpush1.msra.mxu0 %v367
        %772 = vmatprep.subr.mxu0 0.0
        %773 = vmatpush1.msra.mxu0 %v366
        %774 = vmatprep.subr.mxu0 0.0
        %775 = vmatpush1.msra.mxu0 %v365
        %776 = vmatprep.subr.mxu0 0.0
        %777 = vmatpush1.msra.mxu0 %v364
        %778 = vmatprep.subr.mxu0 0.0
        %779 = vmatpush1.msra.mxu0 %v363
        %780 = vmatprep.subr.mxu0 0.0
        %781 = vmatpush1.msra.mxu0 %v362
        %782 = vmatprep.subr.mxu0 0.0
        %783 = vmatpush1.msra.mxu0 %v361
        %784 = vmatprep.subr.mxu0 0.0
        %785 = vmatpush1.msra.mxu0 %v360
        %786 = vmatprep.subr.mxu0 0.0
        %787 = vmatpush1.msra.mxu0 %v359
        %788 = vmatprep.subr.mxu0 0.0
        %789 = vmatpush1.msra.mxu0 %v358
        %790 = vmatprep.subr.mxu0 0.0
        %791 = vmatpush1.msra.mxu0 %v357
        %792 = vmatprep.subr.mxu0 0.0
        %793 = vmatpush1.msra.mxu0 %v356
        %794 = vmatprep.subr.mxu0 0.0
        %795 = vmatpush1.msra.mxu0 %v355
        %796 = vmatprep.subr.mxu0 0.0
        %797 = vmatpush1.msra.mxu0 %v354
        %798 = vmatprep.subr.mxu0 0.0
        %799 = vmatpush1.msra.mxu0 %v353
        %800 = vmatprep.subr.mxu0 0.0
        %801 = vmatpush1.msra.mxu0 %v352
        %802 = vmatprep.subr.mxu0 0.0
        %803 = vmatpush2.msra.mxu0 %v383
        %804 = vmatprep.subr.mxu0 0.0
        %805 = vmatpush2.msra.mxu0 %v382
        %806 = vmatprep.subr.mxu0 0.0
        %807 = vmatpush2.msra.mxu0 %v381
        %808 = vmatprep.subr.mxu0 0.0
        %809 = vmatpush2.msra.mxu0 %v380
        %810 = vmatprep.subr.mxu0 0.0
        %811 = vmatpush2.msra.mxu0 %v379
        %812 = vmatprep.subr.mxu0 0.0
        %813 = vmatpush2.msra.mxu0 %v378
        %814 = vmatprep.subr.mxu0 0.0
        %815 = vmatpush2.msra.mxu0 %v377
        %816 = vmatprep.subr.mxu0 0.0
        %817 = vmatpush2.msra.mxu0 %v376
        %818 = vmatprep.subr.mxu0 0.0
        %819 = vmatpush2.msra.mxu0 %v375
        %820 = vmatprep.subr.mxu0 0.0
        %821 = vmatpush2.msra.mxu0 %v374
        %822 = vmatprep.subr.mxu0 0.0
        %823 = vmatpush2.msra.mxu0 %v373
        %824 = vmatprep.subr.mxu0 0.0
        %825 = vmatpush2.msra.mxu0 %v372
        %826 = vmatprep.subr.mxu0 0.0
        %827 = vmatpush2.msra.mxu0 %v371
        %828 = vmatprep.subr.mxu0 0.0
        %829 = vmatpush2.msra.mxu0 %v370
        %830 = vmatprep.subr.mxu0 0.0
        %831 = vmatpush2.msra.mxu0 %v369
        %832 = vmatprep.subr.mxu0 0.0
        %833 = vmatpush2.msra.mxu0 %v368
        %834 = vmatprep.mubr.f32.mxu0 %v569
        %835 = vmatmul.mubr.f32.gmra.mxu0 %v565
        %v836 = vpop.f32.mrf.mxu0
        %v837 = vadd.f32 %v767, %v836
        %v838 = vpop.f32.mrf.mxu0
        %839 = vdwg.mxu0
        %840 = vmatprep.subr.mxu0 0.0
        %841 = vmatpush1.msra.mxu0 %v399
        %842 = vmatprep.subr.mxu0 0.0
        %843 = vmatpush1.msra.mxu0 %v398
        %844 = vmatprep.subr.mxu0 0.0
        %845 = vmatpush1.msra.mxu0 %v397
        %846 = vmatprep.subr.mxu0 0.0
        %847 = vmatpush1.msra.mxu0 %v396
        %848 = vmatprep.subr.mxu0 0.0
        %849 = vmatpush1.msra.mxu0 %v395
        %850 = vmatprep.subr.mxu0 0.0
        %851 = vmatpush1.msra.mxu0 %v394
        %852 = vmatprep.subr.mxu0 0.0
        %853 = vmatpush1.msra.mxu0 %v393
        %854 = vmatprep.subr.mxu0 0.0
        %855 = vmatpush1.msra.mxu0 %v392
        %856 = vmatprep.subr.mxu0 0.0
        %857 = vmatpush1.msra.mxu0 %v391
        %858 = vmatprep.subr.mxu0 0.0
        %859 = vmatpush1.msra.mxu0 %v390
        %860 = vmatprep.subr.mxu0 0.0
        %861 = vmatpush1.msra.mxu0 %v389
        %862 = vmatprep.subr.mxu0 0.0
        %863 = vmatpush1.msra.mxu0 %v388
        %864 = vmatprep.subr.mxu0 0.0
        %865 = vmatpush1.msra.mxu0 %v387
        %866 = vmatprep.subr.mxu0 0.0
        %867 = vmatpush1.msra.mxu0 %v386
        %868 = vmatprep.subr.mxu0 0.0
        %869 = vmatpush1.msra.mxu0 %v385
        %870 = vmatprep.subr.mxu0 0.0
        %871 = vmatpush1.msra.mxu0 %v384
        %872 = vmatprep.subr.mxu0 0.0
        %873 = vmatpush2.msra.mxu0 %v415
        %874 = vmatprep.subr.mxu0 0.0
        %875 = vmatpush2.msra.mxu0 %v414
        %876 = vmatprep.subr.mxu0 0.0
        %877 = vmatpush2.msra.mxu0 %v413
        %878 = vmatprep.subr.mxu0 0.0
        %879 = vmatpush2.msra.mxu0 %v412
        %880 = vmatprep.subr.mxu0 0.0
        %881 = vmatpush2.msra.mxu0 %v411
        %882 = vmatprep.subr.mxu0 0.0
        %883 = vmatpush2.msra.mxu0 %v410
        %884 = vmatprep.subr.mxu0 0.0
        %885 = vmatpush2.msra.mxu0 %v409
        %886 = vmatprep.subr.mxu0 0.0
        %887 = vmatpush2.msra.mxu0 %v408
        %888 = vmatprep.subr.mxu0 0.0
        %889 = vmatpush2.msra.mxu0 %v407
        %890 = vmatprep.subr.mxu0 0.0
        %891 = vmatpush2.msra.mxu0 %v406
        %892 = vmatprep.subr.mxu0 0.0
        %893 = vmatpush2.msra.mxu0 %v405
        %894 = vmatprep.subr.mxu0 0.0
        %895 = vmatpush2.msra.mxu0 %v404
        %896 = vmatprep.subr.mxu0 0.0
        %897 = vmatpush2.msra.mxu0 %v403
        %898 = vmatprep.subr.mxu0 0.0
        %899 = vmatpush2.msra.mxu0 %v402
        %900 = vmatprep.subr.mxu0 0.0
        %901 = vmatpush2.msra.mxu0 %v401
        %902 = vmatprep.subr.mxu0 0.0
        %903 = vmatpush2.msra.mxu0 %v400
        %904 = vmatprep.mubr.f32.mxu0 %v577
        %905 = vmatmul.mubr.f32.gmra.mxu0 %v573
        %v906 = vpop.f32.mrf.mxu0
        %v907 = vadd.f32 %v837, %v906
        %v908 = vpop.f32.mrf.mxu0
        %909 = vdwg.mxu0
        %910 = vmatprep.subr.mxu0 0.0
        %911 = vmatpush1.msra.mxu0 %v431
        %912 = vmatprep.subr.mxu0 0.0
        %913 = vmatpush1.msra.mxu0 %v430
        %914 = vmatprep.subr.mxu0 0.0
        %915 = vmatpush1.msra.mxu0 %v429
        %916 = vmatprep.subr.mxu0 0.0
        %917 = vmatpush1.msra.mxu0 %v428
        %918 = vmatprep.subr.mxu0 0.0
        %919 = vmatpush1.msra.mxu0 %v427
        %920 = vmatprep.subr.mxu0 0.0
        %921 = vmatpush1.msra.mxu0 %v426
        %922 = vmatprep.subr.mxu0 0.0
        %923 = vmatpush1.msra.mxu0 %v425
        %924 = vmatprep.subr.mxu0 0.0
        %925 = vmatpush1.msra.mxu0 %v424
        %926 = vmatprep.subr.mxu0 0.0
        %927 = vmatpush1.msra.mxu0 %v423
        %928 = vmatprep.subr.mxu0 0.0
        %929 = vmatpush1.msra.mxu0 %v422
        %930 = vmatprep.subr.mxu0 0.0
        %931 = vmatpush1.msra.mxu0 %v421
        %932 = vmatprep.subr.mxu0 0.0
        %933 = vmatpush1.msra.mxu0 %v420
        %934 = vmatprep.subr.mxu0 0.0
        %935 = vmatpush1.msra.mxu0 %v419
        %936 = vmatprep.subr.mxu0 0.0
        %937 = vmatpush1.msra.mxu0 %v418
        %938 = vmatprep.subr.mxu0 0.0
        %939 = vmatpush1.msra.mxu0 %v417
        %940 = vmatprep.subr.mxu0 0.0
        %941 = vmatpush1.msra.mxu0 %v416
        %942 = vmatprep.subr.mxu0 0.0
        %943 = vmatpush2.msra.mxu0 %v447
        %944 = vmatprep.subr.mxu0 0.0
        %945 = vmatpush2.msra.mxu0 %v446
        %946 = vmatprep.subr.mxu0 0.0
        %947 = vmatpush2.msra.mxu0 %v445
        %948 = vmatprep.subr.mxu0 0.0
        %949 = vmatpush2.msra.mxu0 %v444
        %950 = vmatprep.subr.mxu0 0.0
        %951 = vmatpush2.msra.mxu0 %v443
        %952 = vmatprep.subr.mxu0 0.0
        %953 = vmatpush2.msra.mxu0 %v442
        %954 = vmatprep.subr.mxu0 0.0
        %955 = vmatpush2.msra.mxu0 %v441
        %956 = vmatprep.subr.mxu0 0.0
        %957 = vmatpush2.msra.mxu0 %v440
        %958 = vmatprep.subr.mxu0 0.0
        %959 = vmatpush2.msra.mxu0 %v439
        %960 = vmatprep.subr.mxu0 0.0
        %961 = vmatpush2.msra.mxu0 %v438
        %962 = vmatprep.subr.mxu0 0.0
        %963 = vmatpush2.msra.mxu0 %v437
        %964 = vmatprep.subr.mxu0 0.0
        %965 = vmatpush2.msra.mxu0 %v436
        %966 = vmatprep.subr.mxu0 0.0
        %967 = vmatpush2.msra.mxu0 %v435
        %968 = vmatprep.subr.mxu0 0.0
        %969 = vmatpush2.msra.mxu0 %v434
        %970 = vmatprep.subr.mxu0 0.0
        %971 = vmatpush2.msra.mxu0 %v433
        %972 = vmatprep.subr.mxu0 0.0
        %973 = vmatpush2.msra.mxu0 %v432
        %974 = vmatprep.mubr.f32.mxu0 %v585
        %975 = vmatmul.mubr.f32.gmra.mxu0 %v581
        %v976 = vpop.f32.mrf.mxu0
        %v977 = vadd.f32 %v907, %v976
        %v978 = vpop.f32.mrf.mxu0
        %979 = vdwg.mxu0
        %980 = vmatprep.subr.mxu0 0.0
        %981 = vmatpush1.msra.mxu0 %v463
        %982 = vmatprep.subr.mxu0 0.0
        %983 = vmatpush1.msra.mxu0 %v462
        %984 = vmatprep.subr.mxu0 0.0
        %985 = vmatpush1.msra.mxu0 %v461
        %986 = vmatprep.subr.mxu0 0.0
        %987 = vmatpush1.msra.mxu0 %v460
        %988 = vmatprep.subr.mxu0 0.0
        %989 = vmatpush1.msra.mxu0 %v459
        %990 = vmatprep.subr.mxu0 0.0
        %991 = vmatpush1.msra.mxu0 %v458
        %992 = vmatprep.subr.mxu0 0.0
        %993 = vmatpush1.msra.mxu0 %v457
        %994 = vmatprep.subr.mxu0 0.0
        %995 = vmatpush1.msra.mxu0 %v456
        %996 = vmatprep.subr.mxu0 0.0
        %997 = vmatpush1.msra.mxu0 %v455
        %998 = vmatprep.subr.mxu0 0.0
        %999 = vmatpush1.msra.mxu0 %v454
        %1000 = vmatprep.subr.mxu0 0.0
        %1001 = vmatpush1.msra.mxu0 %v453
        %1002 = vmatprep.subr.mxu0 0.0
        %1003 = vmatpush1.msra.mxu0 %v452
        %1004 = vmatprep.subr.mxu0 0.0
        %1005 = vmatpush1.msra.mxu0 %v451
        %1006 = vmatprep.subr.mxu0 0.0
        %1007 = vmatpush1.msra.mxu0 %v450
        %1008 = vmatprep.subr.mxu0 0.0
        %1009 = vmatpush1.msra.mxu0 %v449
        %1010 = vmatprep.subr.mxu0 0.0
        %1011 = vmatpush1.msra.mxu0 %v448
        %1012 = vmatprep.subr.mxu0 0.0
        %1013 = vmatpush2.msra.mxu0 %v479
        %1014 = vmatprep.subr.mxu0 0.0
        %1015 = vmatpush2.msra.mxu0 %v478
        %1016 = vmatprep.subr.mxu0 0.0
        %1017 = vmatpush2.msra.mxu0 %v477
        %1018 = vmatprep.subr.mxu0 0.0
        %1019 = vmatpush2.msra.mxu0 %v476
        %1020 = vmatprep.subr.mxu0 0.0
        %1021 = vmatpush2.msra.mxu0 %v475
        %1022 = vmatprep.subr.mxu0 0.0
        %1023 = vmatpush2.msra.mxu0 %v474
        %1024 = vmatprep.subr.mxu0 0.0
        %1025 = vmatpush2.msra.mxu0 %v473
        %1026 = vmatprep.subr.mxu0 0.0
        %1027 = vmatpush2.msra.mxu0 %v472
        %1028 = vmatprep.subr.mxu0 0.0
        %1029 = vmatpush2.msra.mxu0 %v471
        %1030 = vmatprep.subr.mxu0 0.0
        %1031 = vmatpush2.msra.mxu0 %v470
        %1032 = vmatprep.subr.mxu0 0.0
        %1033 = vmatpush2.msra.mxu0 %v469
        %1034 = vmatprep.subr.mxu0 0.0
        %1035 = vmatpush2.msra.mxu0 %v468
        %1036 = vmatprep.subr.mxu0 0.0
        %1037 = vmatpush2.msra.mxu0 %v467
        %1038 = vmatprep.subr.mxu0 0.0
        %1039 = vmatpush2.msra.mxu0 %v466
        %1040 = vmatprep.subr.mxu0 0.0
        %1041 = vmatpush2.msra.mxu0 %v465
        %1042 = vmatprep.subr.mxu0 0.0
        %1043 = vmatpush2.msra.mxu0 %v464
        %1044 = vmatprep.mubr.f32.mxu0 %v593
        %1045 = vmatmul.mubr.f32.gmra.mxu0 %v589
        %v1046 = vpop.f32.mrf.mxu0
        %v1047 = vadd.f32 %v977, %v1046
        %v1048 = vpop.f32.mrf.mxu0
        %1049 = vdwg.mxu0
        %1050 = vmatprep.subr.mxu0 0.0
        %1051 = vmatpush1.msra.mxu0 %v495
        %1052 = vmatprep.subr.mxu0 0.0
        %1053 = vmatpush1.msra.mxu0 %v494
        %1054 = vmatprep.subr.mxu0 0.0
        %1055 = vmatpush1.msra.mxu0 %v493
        %1056 = vmatprep.subr.mxu0 0.0
        %1057 = vmatpush1.msra.mxu0 %v492
        %1058 = vmatprep.subr.mxu0 0.0
        %1059 = vmatpush1.msra.mxu0 %v491
        %1060 = vmatprep.subr.mxu0 0.0
        %1061 = vmatpush1.msra.mxu0 %v490
        %1062 = vmatprep.subr.mxu0 0.0
        %1063 = vmatpush1.msra.mxu0 %v489
        %1064 = vmatprep.subr.mxu0 0.0
        %1065 = vmatpush1.msra.mxu0 %v488
        %1066 = vmatprep.subr.mxu0 0.0
        %1067 = vmatpush1.msra.mxu0 %v487
        %1068 = vmatprep.subr.mxu0 0.0
        %1069 = vmatpush1.msra.mxu0 %v486
        %1070 = vmatprep.subr.mxu0 0.0
        %1071 = vmatpush1.msra.mxu0 %v485
        %1072 = vmatprep.subr.mxu0 0.0
        %1073 = vmatpush1.msra.mxu0 %v484
        %1074 = vmatprep.subr.mxu0 0.0
        %1075 = vmatpush1.msra.mxu0 %v483
        %1076 = vmatprep.subr.mxu0 0.0
        %1077 = vmatpush1.msra.mxu0 %v482
        %1078 = vmatprep.subr.mxu0 0.0
        %1079 = vmatpush1.msra.mxu0 %v481
        %1080 = vmatprep.subr.mxu0 0.0
        %1081 = vmatpush1.msra.mxu0 %v480
        %1082 = vmatprep.subr.mxu0 0.0
        %1083 = vmatpush2.msra.mxu0 %v511
        %1084 = vmatprep.subr.mxu0 0.0
        %1085 = vmatpush2.msra.mxu0 %v510
        %1086 = vmatprep.subr.mxu0 0.0
        %1087 = vmatpush2.msra.mxu0 %v509
        %1088 = vmatprep.subr.mxu0 0.0
        %1089 = vmatpush2.msra.mxu0 %v508
        %1090 = vmatprep.subr.mxu0 0.0
        %1091 = vmatpush2.msra.mxu0 %v507
        %1092 = vmatprep.subr.mxu0 0.0
        %1093 = vmatpush2.msra.mxu0 %v506
        %1094 = vmatprep.subr.mxu0 0.0
        %1095 = vmatpush2.msra.mxu0 %v505
        %1096 = vmatprep.subr.mxu0 0.0
        %1097 = vmatpush2.msra.mxu0 %v504
        %1098 = vmatprep.subr.mxu0 0.0
        %1099 = vmatpush2.msra.mxu0 %v503
        %1100 = vmatprep.subr.mxu0 0.0
        %1101 = vmatpush2.msra.mxu0 %v502
        %1102 = vmatprep.subr.mxu0 0.0
        %1103 = vmatpush2.msra.mxu0 %v501
        %1104 = vmatprep.subr.mxu0 0.0
        %1105 = vmatpush2.msra.mxu0 %v500
        %1106 = vmatprep.subr.mxu0 0.0
        %1107 = vmatpush2.msra.mxu0 %v499
        %1108 = vmatprep.subr.mxu0 0.0
        %1109 = vmatpush2.msra.mxu0 %v498
        %1110 = vmatprep.subr.mxu0 0.0
        %1111 = vmatpush2.msra.mxu0 %v497
        %1112 = vmatprep.subr.mxu0 0.0
        %1113 = vmatpush2.msra.mxu0 %v496
        %1114 = vmatprep.mubr.f32.mxu0 %v601
        %1115 = vmatmul.mubr.f32.gmra.mxu0 %v597
        %v1116 = vpop.f32.mrf.mxu0
        %v1117 = vadd.f32 %v1047, %v1116
        %v1118 = vpop.f32.mrf.mxu0
        %1119 = vdwg.mxu0
        %1120 = vmatprep.subr.mxu0 0.0
        %1121 = vmatpush1.msra.mxu0 %v527
        %1122 = vmatprep.subr.mxu0 0.0
        %1123 = vmatpush1.msra.mxu0 %v526
        %1124 = vmatprep.subr.mxu0 0.0
        %1125 = vmatpush1.msra.mxu0 %v525
        %1126 = vmatprep.subr.mxu0 0.0
        %1127 = vmatpush1.msra.mxu0 %v524
        %1128 = vmatprep.subr.mxu0 0.0
        %1129 = vmatpush1.msra.mxu0 %v523
        %1130 = vmatprep.subr.mxu0 0.0
        %1131 = vmatpush1.msra.mxu0 %v522
        %1132 = vmatprep.subr.mxu0 0.0
        %1133 = vmatpush1.msra.mxu0 %v521
        %1134 = vmatprep.subr.mxu0 0.0
        %1135 = vmatpush1.msra.mxu0 %v520
        %1136 = vmatprep.subr.mxu0 0.0
        %1137 = vmatpush1.msra.mxu0 %v519
        %1138 = vmatprep.subr.mxu0 0.0
        %1139 = vmatpush1.msra.mxu0 %v518
        %1140 = vmatprep.subr.mxu0 0.0
        %1141 = vmatpush1.msra.mxu0 %v517
        %1142 = vmatprep.subr.mxu0 0.0
        %1143 = vmatpush1.msra.mxu0 %v516
        %1144 = vmatprep.subr.mxu0 0.0
        %1145 = vmatpush1.msra.mxu0 %v515
        %1146 = vmatprep.subr.mxu0 0.0
        %1147 = vmatpush1.msra.mxu0 %v514
        %1148 = vmatprep.subr.mxu0 0.0
        %1149 = vmatpush1.msra.mxu0 %v513
        %1150 = vmatprep.subr.mxu0 0.0
        %1151 = vmatpush1.msra.mxu0 %v512
        %1152 = vmatprep.subr.mxu0 0.0
        %1153 = vmatpush2.msra.mxu0 %v543
        %1154 = vmatprep.subr.mxu0 0.0
        %1155 = vmatpush2.msra.mxu0 %v542
        %1156 = vmatprep.subr.mxu0 0.0
        %1157 = vmatpush2.msra.mxu0 %v541
        %1158 = vmatprep.subr.mxu0 0.0
        %1159 = vmatpush2.msra.mxu0 %v540
        %1160 = vmatprep.subr.mxu0 0.0
        %1161 = vmatpush2.msra.mxu0 %v539
        %1162 = vmatprep.subr.mxu0 0.0
        %1163 = vmatpush2.msra.mxu0 %v538
        %1164 = vmatprep.subr.mxu0 0.0
        %1165 = vmatpush2.msra.mxu0 %v537
        %1166 = vmatprep.subr.mxu0 0.0
        %1167 = vmatpush2.msra.mxu0 %v536
        %1168 = vmatprep.subr.mxu0 0.0
        %1169 = vmatpush2.msra.mxu0 %v535
        %1170 = vmatprep.subr.mxu0 0.0
        %1171 = vmatpush2.msra.mxu0 %v534
        %1172 = vmatprep.subr.mxu0 0.0
        %1173 = vmatpush2.msra.mxu0 %v533
        %1174 = vmatprep.subr.mxu0 0.0
        %1175 = vmatpush2.msra.mxu0 %v532
        %1176 = vmatprep.subr.mxu0 0.0
        %1177 = vmatpush2.msra.mxu0 %v531
        %1178 = vmatprep.subr.mxu0 0.0
        %1179 = vmatpush2.msra.mxu0 %v530
        %1180 = vmatprep.subr.mxu0 0.0
        %1181 = vmatpush2.msra.mxu0 %v529
        %1182 = vmatprep.subr.mxu0 0.0
        %1183 = vmatpush2.msra.mxu0 %v528
        %1184 = vmatprep.mubr.f32.mxu0 %v609
        %1185 = vmatmul.mubr.f32.gmra.mxu0 %v605
        %v1186 = vpop.f32.mrf.mxu0
        %v1187 = vadd.f32 %v1117, %v1186
        %v1188 = vpop.f32.mrf.mxu0
        %1189 = vdwg.mxu0
        %v1190 = vmax.f32 %v1187, 0.0
        %vm1191 = vcmask 261120
        %v1192 = vsel %vm1191, %v1190, 0.0
        %1193 = vst [vmem:[%s162] sm:$0x1] %v1192
        %s1194 = sand.u32 %s93, 1
        %s1195 = scalar_lea.sflag [#allocation3], %s1194
        %s1196 = sand.u32 %s93, 1
        %s1197 = scalar_lea.vmem [#allocation2], %s1196
        // Predicated region
        $region33: #{_base_encoder_forward.1} parent=31 // pred_check
          %p1198 = pneg %p103
        $region34: #{_base_encoder_forward.1} parent=31 // pred_check_branch
          %1200 = sbr.rel (%p1198) target = $region36
        $region35: #{_base_encoder_forward.1} parent=31 // pred_region
          %s1202 = ssub.s32 16, 16
          %1203 = vsyncadd %s1195, %s1202
          %s1204 = smul.addr %s17, 16
          %s1205 = scalar_lea.hbm %s3, %s1204
          %s1207 = sshll.u32 %s1197, 4
          %s1208 = int_to_ptr.vmem [resolvable:$true] %s1207
          %1210 = dma.vmem_to_hbm [thread:$0]  %s1208, 16, %s1205, %s1195
        $region36: #{_base_encoder_forward.1} parent=31 // pred_fallthru
          _
      $region32: #{_base_encoder_forward.1} parent=5 // pred_fallthru
        _
      %p1211 = scmp.le.s32.totalorder 2, %s12
      // Predicated region
      $region37: #{_base_encoder_forward.1} parent=5 // pred_check
        %p1212 = pneg %p1211
      $region38: #{_base_encoder_forward.1} parent=5 // pred_check_branch
        %1214 = sbr.rel (%p1212) target = $region40
      $region39: #{_base_encoder_forward.1} parent=5 // pred_region
        %s1215 = ssub.s32 %s12, 2
        // Predicated region
        $region41: #{_base_encoder_forward.1} parent=39 // pred_check
          %p1216 = pneg %p109
        $region42: #{_base_encoder_forward.1} parent=39 // pred_check_branch
          %1218 = sbr.rel (%p1216) target = $region44
        $region43: #{_base_encoder_forward.1} parent=39 // pred_region
          %s1219 = sand.u32 %s94, 1
          %s1220 = scalar_lea.sflag [#allocation3], %s1219
          %s1221 = sand.u32 %s94, 1
          %s1222 = scalar_lea.vmem [#allocation2], %s1221
          %1223 = dma.done %s1220, 16
        $region44: #{_base_encoder_forward.1} parent=39 // pred_fallthru
          _
      $region40: #{_base_encoder_forward.1} parent=5 // pred_fallthru
        _
    $region6: #{_base_encoder_forward.1} parent=1 // loop_footer
      %s16 = sadd.s32 1, %s12
    $region7: #{_base_encoder_forward.1} parent=1 // loop_footer_branch
      %11 = sbr.rel target = $region3
    $region8: #{_base_encoder_forward.1} parent=1 // loop_exit
      _
    %1224 = vsyncpa [#allocation3], 1
    %s1225 = scalar_lea.sflag [#allocation3], 1
    %1226 = vsyncpa %s1225, 1

</llo_original>
